<compile_context>
chip_gen: v5e
topology: v5e:2x2
jax: 0.10.0
libtpu: 0.0.40
codegen_flags: <defaults>
</compile_context>

<pallas_src>
import functools

import jax
import jax.numpy as jnp
from jax import lax
from jax.experimental import pallas as pl
from jax.experimental.pallas import tpu as pltpu


def _focal_weight(d, gamma):
    """(1 - pt) ** gamma with a cheap VPU path for small integer gamma."""
    g = float(gamma)
    if g == 0.0:
        return jnp.ones_like(d)
    if g.is_integer() and 0.0 < g <= 8.0:
        w = d
        for _ in range(int(g) - 1):
            w = w * d
        return w
    # Fractional gamma: fall back to pow (log+exp on the EUP).
    return d ** g


def _focal_loss_kernel(gamma, true_n, tile_rows, needs_mask,
                       logits_ref, target_ref, alpha_ref, out_ref):
    x = logits_ref[...].astype(jnp.float32)      # (TN, C) logits
    tgt = target_ref[...]                        # (TN, 1) int32 class ids
    alpha = alpha_ref[...].astype(jnp.float32)   # (1, C) class weights

    n_rows, c = x.shape

    # One-hot target mask as a float multiplier (VPU).  For the tail tile the
    # validity mask is folded in, so padded rows get at == 0 -> loss == 0.
    col = lax.broadcasted_iota(jnp.int32, (n_rows, c), 1)
    onehot = col == tgt
    if needs_mask:
        row = (lax.broadcasted_iota(jnp.int32, (n_rows, c), 0)
               + pl.program_id(0) * tile_rows)
        onehot = jnp.logical_and(onehot, row < true_n)
    onehot_f = onehot.astype(jnp.float32)

    # Numerically-stable log-softmax pieces (cross-lane reductions on XLU).
    m = jnp.max(x, axis=1, keepdims=True)                      # (TN, 1)
    s = jnp.sum(jnp.exp(x - m), axis=1, keepdims=True)         # (TN, 1)
    lse = jnp.log(s) + m                                       # (TN, 1)

    xt = jnp.sum(onehot_f * x, axis=1, keepdims=True)          # x[i, t_i]
    at = jnp.sum(onehot_f * alpha, axis=1, keepdims=True)      # alpha[t_i]

    logpt = xt - lse                                           # (TN, 1)
    pt = jnp.exp(logpt)
    w = _focal_weight(1.0 - pt, gamma)

    loss = -(w * logpt * at)                                   # (TN, 1)
    partial = jnp.sum(loss)                                    # scalar per tile
    out_ref[...] = jnp.broadcast_to(partial, out_ref.shape).astype(jnp.float32)


def _choose_tile_rows(n, c, itemsize, max_tile_rows=None):
    # Keep one double-buffered logits tile <= ~8 MiB so 2 buffers + the small
    # target/alpha/output blocks fit the default scoped VMEM limit on every
    # generation (v7x has the smallest physical VMEM: 64 MiB).
    per_buffer_budget = 8 * 1024 * 1024
    tn = per_buffer_budget // max(c * itemsize, 1)
    tn = max(8, min(1024, (tn // 8) * 8))          # multiple of 8, capped
    if max_tile_rows is not None:
        tn = max(8, min(tn, (int(max_tile_rows) // 8) * 8))
    n_pad8 = ((n + 7) // 8) * 8
    return min(tn, n_pad8)


def heuristic_focal_loss(inputs, target, alpha, gamma=2.0, size_average=True,
                         max_tile_rows=None):
    """inputs: (N, C) float32/bfloat16 logits; target: (N,) int; alpha: (C,) float."""
    n, c = inputs.shape
    target2d = target.reshape(n, 1).astype(jnp.int32)
    alpha2d = jnp.asarray(alpha, jnp.float32).reshape(1, c)

    itemsize = jnp.dtype(inputs.dtype).itemsize
    tn = _choose_tile_rows(n, c, itemsize, max_tile_rows)
    n_pad = ((n + tn - 1) // tn) * tn
    if n_pad != n:
        # Pad with finite values (zeros); padded rows are masked in-kernel.
        inputs = jnp.pad(inputs, ((0, n_pad - n), (0, 0)))
        target2d = jnp.pad(target2d, ((0, n_pad - n), (0, 0)))
    num_tiles = n_pad // tn

    kernel = functools.partial(
        _focal_loss_kernel, float(gamma), int(n), int(tn), bool(n_pad != n))

    cost = pl.CostEstimate(
        flops=8 * n_pad * c,
        transcendentals=n_pad * c + 3 * n_pad,
        bytes_accessed=int(itemsize * n_pad * c + 4 * n_pad + 4 * c
                           + 4 * num_tiles * 128),
    )

    partials = pl.pallas_call(
        kernel,
        out_shape=jax.ShapeDtypeStruct((num_tiles, 1, 128), jnp.float32),
        grid=(num_tiles,),
        in_specs=[
            pl.BlockSpec((tn, c), lambda i: (i, 0)),   # logits tile (pipelined)
            pl.BlockSpec((tn, 1), lambda i: (i, 0)),   # target tile
            pl.BlockSpec((1, c), lambda i: (0, 0)),    # alpha (resident)
        ],
        out_specs=pl.BlockSpec((1, 1, 128), lambda i: (i, 0, 0)),
        compiler_params=pltpu.CompilerParams(
            dimension_semantics=("parallel",),
        ),
        cost_estimate=cost,
    )(inputs, target2d, alpha2d)

    total = jnp.sum(partials[:, 0, 0])
    if size_average:
        return total / jnp.float32(n)
    return total


def _reference(inputs, target, alpha, gamma=2.0, size_average=True):
    logp = jax.nn.log_softmax(inputs.astype(jnp.float32), axis=1)
    logpt = jnp.take_along_axis(logp, target.reshape(-1, 1), axis=1).reshape(-1)
    pt = jnp.exp(logpt)
    at = jnp.asarray(alpha, jnp.float32)[target]
    loss = -1.0 * (1.0 - pt) ** gamma * logpt * at
    return loss.mean() if size_average else loss.sum()


if __name__ == "__main__":
    key = jax.random.PRNGKey(0)
    k1, k2, k3, k4 = jax.random.split(key, 4)

    # Case 1: small aligned batch, gamma=2 (integer fast path), mean reduction.
    N1, C = 8, 16
    inputs1 = jax.random.normal(k1, (N1, C), dtype=jnp.float32)
    target1 = jax.random.randint(k2, (N1,), 0, C, dtype=jnp.int32)
    alpha = 0.25 + 0.5 * (jnp.arange(C, dtype=jnp.float32) / C)

    out1 = heuristic_focal_loss(inputs1, target1, alpha, gamma=2.0,
                                size_average=True)
    jax.block_until_ready(out1)
    ref1 = _reference(inputs1, target1, alpha, gamma=2.0, size_average=True)
    assert jnp.allclose(out1, ref1, rtol=1e-5, atol=1e-6), (out1, ref1)

    # Case 2: multi-tile grid + ragged tail (N not a multiple of the tile),
    # sum reduction.  max_tile_rows forces 3 tiles of 8 rows (4 padded rows).
    N2 = 20
    inputs2 = jax.random.normal(k3, (N2, C), dtype=jnp.float32)
    target2 = jax.random.randint(k4, (N2,), 0, C, dtype=jnp.int32)
    out2 = heuristic_focal_loss(inputs2, target2, alpha, gamma=2.0,
                                size_average=False, max_tile_rows=8)
    jax.block_until_ready(out2)
    ref2 = _reference(inputs2, target2, alpha, gamma=2.0, size_average=False)
    assert jnp.allclose(out2, ref2, rtol=1e-5, atol=1e-5), (out2, ref2)

    # Case 3: fractional gamma (pow fallback path), mean reduction.
    out3 = heuristic_focal_loss(inputs1, target1, alpha, gamma=1.5,
                                size_average=True)
    jax.block_until_ready(out3)
    ref3 = _reference(inputs1, target1, alpha, gamma=1.5, size_average=True)
    assert jnp.allclose(out3, ref3, rtol=1e-5, atol=1e-6), (out3, ref3)

    print("KERNEL_OK")
</pallas_src>

<mosaic_0001>
module attributes {stable_mosaic.version = 11 : i64} {
  func.func @_focal_loss_kernel(%arg0: i32, %arg1: memref<8x16xf32, #tpu.memory_space<vmem>>, %arg2: memref<8x1xi32, #tpu.memory_space<vmem>>, %arg3: memref<1x16xf32, #tpu.memory_space<vmem>>, %arg4: memref<1x1x128xf32, #tpu.memory_space<vmem>>) attributes {dimension_semantics = [#tpu.dimension_semantics<parallel>], iteration_bounds = array<i64: 1>, scalar_prefetch = 0 : i64, scratch_operands = 0 : i64, tpu.core_type = #tpu.core_type<tc>, window_params = [{transform_indices = @transform_0, window_bounds = array<i64: 8, 16>}, {transform_indices = @transform_1, window_bounds = array<i64: 8, 1>}, {pipeline_mode = #tpu.pipeline_mode<synchronous>, transform_indices = @transform_2, window_bounds = array<i64: 1, 16>}, {transform_indices = @transform_3, window_bounds = array<i64: 1, 1, 128>}]} {
    %c0 = arith.constant 0 : index
    %c0_0 = arith.constant 0 : index
    %0 = vector.load %arg1[%c0, %c0_0] : memref<8x16xf32, #tpu.memory_space<vmem>>, vector<8x16xf32>
    %c0_1 = arith.constant 0 : index
    %c0_2 = arith.constant 0 : index
    %1 = vector.load %arg2[%c0_1, %c0_2] : memref<8x1xi32, #tpu.memory_space<vmem>>, vector<8x1xi32>
    %c0_3 = arith.constant 0 : index
    %c0_4 = arith.constant 0 : index
    %2 = vector.load %arg3[%c0_3, %c0_4] : memref<1x16xf32, #tpu.memory_space<vmem>>, vector<1x16xf32>
    %3 = tpu.iota {dimensions = array<i32: 1>} : vector<8x16xi32>
    %4 = vector.broadcast %1 : vector<8x1xi32> to vector<8x16xi32>
    %5 = arith.cmpi eq, %3, %4 : vector<8x16xi32>
    %6 = arith.extui %5 : vector<8x16xi1> to vector<8x16xi32>
    %7 = arith.sitofp %6 : vector<8x16xi32> to vector<8x16xf32>
    %cst = arith.constant dense<0xFF800000> : vector<8xf32>
    %8 = vector.multi_reduction <maximumf>, %0, %cst [1] : vector<8x16xf32> to vector<8xf32>
    %9 = vector.shape_cast %8 : vector<8xf32> to vector<8x1xf32>
    %10 = vector.broadcast %9 : vector<8x1xf32> to vector<8x16xf32>
    %11 = arith.subf %0, %10 : vector<8x16xf32>
    %12 = math.exp %11 : vector<8x16xf32>
    %cst_5 = arith.constant dense<0.000000e+00> : vector<8xf32>
    %13 = vector.multi_reduction <add>, %12, %cst_5 [1] : vector<8x16xf32> to vector<8xf32>
    %14 = vector.shape_cast %13 : vector<8xf32> to vector<8x1xf32>
    %15 = math.log %14 : vector<8x1xf32>
    %16 = arith.addf %15, %9 : vector<8x1xf32>
    %17 = arith.mulf %7, %0 : vector<8x16xf32>
    %cst_6 = arith.constant dense<0.000000e+00> : vector<8xf32>
    %18 = vector.multi_reduction <add>, %17, %cst_6 [1] : vector<8x16xf32> to vector<8xf32>
    %19 = vector.shape_cast %18 : vector<8xf32> to vector<8x1xf32>
    %20 = vector.broadcast %2 : vector<1x16xf32> to vector<8x16xf32>
    %21 = arith.mulf %7, %20 : vector<8x16xf32>
    %cst_7 = arith.constant dense<0.000000e+00> : vector<8xf32>
    %22 = vector.multi_reduction <add>, %21, %cst_7 [1] : vector<8x16xf32> to vector<8xf32>
    %23 = vector.shape_cast %22 : vector<8xf32> to vector<8x1xf32>
    %24 = arith.subf %19, %16 : vector<8x1xf32>
    %25 = math.exp %24 : vector<8x1xf32>
    %cst_8 = arith.constant 1.000000e+00 : f32
    %26 = vector.broadcast %cst_8 : f32 to vector<8x1xf32>
    %27 = arith.subf %26, %25 : vector<8x1xf32>
    %28 = arith.mulf %27, %27 : vector<8x1xf32>
    %29 = arith.mulf %28, %24 : vector<8x1xf32>
    %30 = arith.mulf %29, %23 : vector<8x1xf32>
    %cst_9 = arith.constant 0.000000e+00 : f32
    %31 = vector.broadcast %cst_9 : f32 to vector<8x1xf32>
    %32 = arith.subf %31, %30 : vector<8x1xf32>
    %33 = vector.shape_cast %32 : vector<8x1xf32> to vector<1x8x1xf32>
    %cst_10 = arith.constant dense<0.000000e+00> : vector<1xf32>
    %34 = vector.multi_reduction <add>, %33, %cst_10 [1, 2] : vector<1x8x1xf32> to vector<1xf32>
    %35 = vector.shape_cast %34 : vector<1xf32> to vector<1x1x1xf32>
    %36 = vector.extract %35[0, 0, 0] : f32 from vector<1x1x1xf32>
    %37 = vector.broadcast %36 : f32 to vector<1x1x128xf32>
    %c0_11 = arith.constant 0 : index
    %c0_12 = arith.constant 0 : index
    %c0_13 = arith.constant 0 : index
    %38 = vector.load %arg4[%c0_11, %c0_12, %c0_13] : memref<1x1x128xf32, #tpu.memory_space<vmem>>, vector<1x1x128xf32>
    tpu.vector_store %arg4[%c0_11, %c0_12, %c0_13], %37 {strides = array<i32>} : memref<1x1x128xf32, #tpu.memory_space<vmem>>, vector<1x1x128xf32>,
    return
  }
  func.func @transform_0(%arg0: i32) -> (i32, i32) {
    %c0_i32 = arith.constant 0 : i32
    %c0_i32_0 = arith.constant 0 : i32
    return %arg0, %c0_i32 : i32, i32
  }
  func.func @transform_1(%arg0: i32) -> (i32, i32) {
    %c0_i32 = arith.constant 0 : i32
    %c0_i32_0 = arith.constant 0 : i32
    return %arg0, %c0_i32 : i32, i32
  }
  func.func @transform_2(%arg0: i32) -> (i32, i32) {
    %c0_i32 = arith.constant 0 : i32
    %c0_i32_0 = arith.constant 0 : i32
    %c0_i32_1 = arith.constant 0 : i32
    return %c0_i32, %c0_i32_0 : i32, i32
  }
  func.func @transform_3(%arg0: i32) -> (i32, i32, i32) {
    %c0_i32 = arith.constant 0 : i32
    %c0_i32_0 = arith.constant 0 : i32
    %c0_i32_1 = arith.constant 0 : i32
    return %arg0, %c0_i32, %c0_i32_0 : i32, i32, i32
  }
}

</mosaic_0001>

<llo_original>
// kernel: tpu_custom_call.1
$region0: #{tpu_custom_call.1}
  #allocation0 [shape = 'u32[]', space=smem, size = 0x4, offset = 0x4, fixed_abs, tag = 'smem constant byte address 0x4 - core index']
  #allocation1 [shape = 'u32[72,128]{1,0:T(1,128)}', space=vmem, size = 0x9000, scoped, tag = 'internal scratch']
  %s0 = inlined_call_operand.vmem [shape: f32[8,16], index: 0, kind: input, shape index: {}]
  %s1 = inlined_call_operand.vmem [shape: s32[8,1], index: 1, kind: input, shape index: {}]
  %s2 = inlined_call_operand.vmem [shape: f32[1,16], index: 2, kind: input, shape index: {}]
  %s3 = inlined_call_operand.hbm [shape: f32[1,1,128], index: 3, kind: output, shape index: {}]
  %s4 = sld [smem:[#allocation0]]
  $region22: #{tpu_custom_call.1} parent=0
    _
  %s6 = ssub.s32 1, %s4
  %s7 = scalar_select 0, %s6, %s4
  $region1: #{tpu_custom_call.1} parent=0
    #allocation2 [shape = 'u8[512]{0}', space=vmem, size = 0x400, scoped, tag = 'output window, operand 0, single buffered']
    #allocation3 [shape = 's32[1]{0}', space=sflag, size = 0x4, scoped, tag = 'scoped memory for tpu_custom_call.1']
    %8 = vsyncpa [#allocation3], 0
    // Predicated region
    $region2: #{tpu_custom_call.1} parent=1 // pred_check
      _
    $region3: #{tpu_custom_call.1} parent=1 // pred_check_branch
      %10 = sbr.rel (0) target = $region5
    $region4: #{tpu_custom_call.1} parent=1 // pred_region
      _
    $region5: #{tpu_custom_call.1} parent=1 // pred_fallthru
      _
    // Predicated region
    $region6: #{tpu_custom_call.1} parent=1 // pred_check
      _
    $region7: #{tpu_custom_call.1} parent=1 // pred_check_branch
      %12 = sbr.rel (0) target = $region9
    $region8: #{tpu_custom_call.1} parent=1 // pred_region
      _
    $region9: #{tpu_custom_call.1} parent=1 // pred_fallthru
      _
    // Predicated region
    $region10: #{tpu_custom_call.1} parent=1 // pred_check
      _
    $region11: #{tpu_custom_call.1} parent=1 // pred_check_branch
      %14 = sbr.rel (0) target = $region13
    $region12: #{tpu_custom_call.1} parent=1 // pred_region
      _
    $region13: #{tpu_custom_call.1} parent=1 // pred_fallthru
      _
    %v15 = vld [vmem:[%s0] sm:$0xff]
    %v16 = vld [vmem:[%s1] sm:$0xff]
    %v17 = vld [vmem:[%s2] sm:$0x1]
    %v18 = vlaneseq
    %v19 = vand.u32 %v18, 127
    %20 = vset.pattern.permute.xlu0 0
    %21 = vperm.xlu0 %20, %v16
    %v22 = vpop.permute.xlu0 %21
    %vm23 = vcmp.eq.s32.totalorder %v19, %v22
    %v24 = vsel %vm23, 1, 0
    %v25 = vcvt.s32.f32 %v24
    %vm26 = vcmask 130048
    %v27 = vsel %vm26, %v15, -inf
    %28 = vmax.xlane.f32.xlu0 %v27
    %v29 = vpop.xlane.xlu0 %28
    %v30 = vsub.f32 %v15, %v29
    %v31 = vmul.f32 %v30, 1.442695
    %v32 = vpow.pop %v31
    %v33 = vsel %vm26, %v32, 0.0
    %34 = vadd.xlane.f32.xlu0 %v33
    %v35 = vpop.xlane.xlu0 %34
    %v36 = vlog2.pop %v35
    %v37 = vmul.f32 %v36, 0.6931472
    %v38 = vadd.f32 %v37, %v29
    %v39 = vmul.f32 %v25, %v15
    %v40 = vsel %vm26, %v39, 0.0
    %41 = vadd.xlane.f32.xlu0 %v40
    %v42 = vpop.xlane.xlu0 %41
    %v44 = vperm.slane %v17, 0
    %v46 = vmul.f32 %v25, %v44
    %v47 = vsel %vm26, %v46, 0.0
    %48 = vadd.xlane.f32.xlu0 %v47
    %v49 = vpop.xlane.xlu0 %48
    %v50 = vsub.f32 %v42, %v38
    %v51 = vmul.f32 %v50, 1.442695
    %v52 = vpow.pop %v51
    %v53 = vsub.f32 1.0, %v52
    %v54 = vmul.f32 %v53, %v53
    %v55 = vmul.f32 %v54, %v50
    %v56 = vmul.f32 %v55, %v49
    %v57 = vsub.f32 0.0, %v56
    %vm58 = vcmask 7168
    %v59 = vsel %vm58, %v57, 0.0
    %60 = vadd.xlane.f32.xlu0 %v59
    %v61 = vpop.xlane.xlu0 %60
    %v62 = vrot.slane %v61, 4
    %v63 = vadd.f32 %v61, %v62
    %v64 = vrot.slane %v63, 2
    %v65 = vadd.f32 %v63, %v64
    %v66 = vrot.slane %v65, 1
    %v67 = vadd.f32 %v65, %v66
    %s68 = vtos %v67
    %v69 = vstv %s68
    %70 = vst [vmem:[#allocation2] sm:$0x1] %v69
    // Predicated region
    $region14: #{tpu_custom_call.1} parent=1 // pred_check
      _
    $region15: #{tpu_custom_call.1} parent=1 // pred_check_branch
      %72 = sbr.rel (0) target = $region17
    $region16: #{tpu_custom_call.1} parent=1 // pred_region
      %74 = vsyncadd [#allocation3], 0
      %s76 = sshll.u32 [#allocation2], 4
      %s77 = int_to_ptr.vmem [resolvable:$true] %s76
      %s78 = sshll.u32 %s3, 4
      %s79 = int_to_ptr.hbm [resolvable:$true] %s78
      %81 = dma.vmem_to_hbm [thread:$0]  %s77, 16, %s79, [#allocation3]
    $region17: #{tpu_custom_call.1} parent=1 // pred_fallthru
      _
    // Predicated region
    $region18: #{tpu_custom_call.1} parent=1 // pred_check
      _
    $region19: #{tpu_custom_call.1} parent=1 // pred_check_branch
      %83 = sbr.rel (0) target = $region21
    $region20: #{tpu_custom_call.1} parent=1 // pred_region
      %85 = dma.done [#allocation3], 16
    $region21: #{tpu_custom_call.1} parent=1 // pred_fallthru
      _
    %86 = vsyncpa [#allocation3], 1

</llo_original>
